<compile_context>
chip_gen: v5e
topology: v5e:2x2
jax: 0.10.0
libtpu: 0.0.40
codegen_flags: <defaults>
</compile_context>

<pallas_src>
import jax
import jax.numpy as jnp
from jax.experimental import pallas as pl
from jax.experimental.pallas import tpu as pltpu
import numpy as np

# Synthetic choice for the data-dependent dimension (max movie id in the
# dataset). Kept a multiple of 128 for lane-dense loads/stores; pad the real
# dataset's feature dim in the wrapper if it is not.
NB_MOVIES = 128
H1, H2 = 20, 10


def sae_kernel(x_ref,
               w1_ref, b1_ref,
               w2_ref, b2_ref,
               w3_ref, b3_ref,
               w4_ref, b4_ref,
               o_ref):
    # MXU compute dtype is whatever the weights were cast to by the wrapper
    # (bf16 by default); accumulation and all VPU/EUP work stay in f32.
    cdt = w1_ref.dtype
    # Cast the f32 input tile to the MXU dtype in-kernel (cheap VPU work,
    # hidden under the input DMA) rather than in a wrapper-side HBM pass.
    x = x_ref[...].astype(cdt)

    # fc1 -> sigmoid
    h = jnp.dot(x, w1_ref[...], preferred_element_type=jnp.float32) + b1_ref[...]
    h = jax.nn.sigmoid(h)

    # fc2 -> sigmoid
    h = jnp.dot(h.astype(cdt), w2_ref[...],
                preferred_element_type=jnp.float32) + b2_ref[...]
    h = jax.nn.sigmoid(h)

    # fc3 -> sigmoid
    h = jnp.dot(h.astype(cdt), w3_ref[...],
                preferred_element_type=jnp.float32) + b3_ref[...]
    h = jax.nn.sigmoid(h)

    # fc4 (no activation)
    out = jnp.dot(h.astype(cdt), w4_ref[...],
                  preferred_element_type=jnp.float32) + b4_ref[...]
    o_ref[...] = out.astype(o_ref.dtype)


def _round_up(n, m):
    return ((n + m - 1) // m) * m


def sae_forward(x, params, *, block_b=4096, compute_dtype=jnp.bfloat16,
                out_dtype=jnp.float32, vmem_limit_bytes=None):
    """Run the SAE forward pass.

    x: (B, NB_MOVIES) float32.  params: 4 tuples of ((in, out) weight, (1, out) bias).
    Output: (B, NB_MOVIES) out_dtype (default float32).
    """
    (w1, b1), (w2, b2), (w3, b3), (w4, b4) = params
    B, F = x.shape
    assert F == NB_MOVIES, f"expected feature dim {NB_MOVIES}, got {F}"

    # Batch tile: large enough to amortize the ~0.35 us per-grid-step overhead
    # against the per-tile DMA, but never (much) bigger than the sublane-padded
    # batch itself.  TB is always a multiple of 8 (sublane granularity).
    TB = min(block_b, _round_up(B, 8))
    TB = _round_up(TB, 8)
    # Partial edge block handles B % TB != 0: no cross-row reduction exists, so
    # the garbage rows in the tail tile are benign and their writes discarded.
    grid = (pl.cdiv(B, TB),)

    # Tiny weights cast once to the MXU dtype (x itself stays f32 in HBM and is
    # cast inside the kernel); biases stay f32.
    w1c, w2c, w3c, w4c = (w.astype(compute_dtype) for w in (w1, w2, w3, w4))

    x_spec = pl.BlockSpec((TB, F), lambda i: (i, 0))
    out_spec = pl.BlockSpec((TB, F), lambda i: (i, 0))

    def resident(arr):
        # Whole (tiny) array, same block for every grid step -> stays in VMEM.
        return pl.BlockSpec(arr.shape, lambda i: (0, 0))

    out = pl.pallas_call(
        sae_kernel,
        out_shape=jax.ShapeDtypeStruct((B, F), out_dtype),
        grid=grid,
        in_specs=[x_spec,
                  resident(w1c), resident(b1),
                  resident(w2c), resident(b2),
                  resident(w3c), resident(b3),
                  resident(w4c), resident(b4)],
        out_specs=out_spec,
        compiler_params=pltpu.CompilerParams(
            dimension_semantics=("parallel",),
            vmem_limit_bytes=vmem_limit_bytes),
    )(x, w1c, b1, w2c, b2, w3c, b3, w4c, b4)

    return out


def init_linear(key, in_features, out_features):
    # Matches PyTorch nn.Linear default init: U(-1/sqrt(in), 1/sqrt(in)).
    kw, kb = jax.random.split(key)
    bound = 1.0 / np.sqrt(in_features)
    # Stored transposed: (in, out) so the kernel computes x @ W.
    w = jax.random.uniform(kw, (in_features, out_features), jnp.float32,
                           minval=-bound, maxval=bound)
    b = jax.random.uniform(kb, (1, out_features), jnp.float32,
                           minval=-bound, maxval=bound)
    return w, b


def reference_forward(x, params):
    (w1, b1), (w2, b2), (w3, b3), (w4, b4) = params
    h = jax.nn.sigmoid(x @ w1 + b1)
    h = jax.nn.sigmoid(h @ w2 + b2)
    h = jax.nn.sigmoid(h @ w3 + b3)
    return h @ w4 + b4


if __name__ == "__main__":
    key = jax.random.PRNGKey(0)
    k_x, k1, k2, k3, k4 = jax.random.split(key, 5)

    batch = 24
    # Synthetic "ratings" input (values in [0, 5]), one row per user.
    x = jax.random.uniform(k_x, (batch, NB_MOVIES), jnp.float32,
                           minval=0.0, maxval=5.0)

    params = (
        init_linear(k1, NB_MOVIES, H1),  # fc1
        init_linear(k2, H1, H2),         # fc2
        init_linear(k3, H2, H1),         # fc3
        init_linear(k4, H1, NB_MOVIES),  # fc4
    )

    ref = reference_forward(x, params)

    # 1) Exact-path check (f32 matmuls) with a small tile to exercise the
    #    multi-step batch grid + resident-weight BlockSpecs.
    out_f32 = sae_forward(x, params, block_b=8, compute_dtype=jnp.float32)
    out_f32 = jax.block_until_ready(out_f32)
    np.testing.assert_allclose(np.asarray(out_f32), np.asarray(ref),
                               rtol=1e-5, atol=1e-5)

    # 2) Ragged batch (B % TB != 0): exercises the partial edge block path
    #    (no jnp.pad copy of x), still exact f32.
    x_ragged = x[:20]
    out_ragged = sae_forward(x_ragged, params, block_b=8,
                             compute_dtype=jnp.float32)
    out_ragged = jax.block_until_ready(out_ragged)
    np.testing.assert_allclose(np.asarray(out_ragged), np.asarray(ref)[:20],
                               rtol=1e-5, atol=1e-5)

    # 3) Default fast path (f32 x streamed in, cast to bf16 in-kernel for the
    #    MXU, f32 accumulate / bias / sigmoid, f32 output).
    out_bf16 = sae_forward(x, params)
    out_bf16 = jax.block_until_ready(out_bf16)
    np.testing.assert_allclose(np.asarray(out_bf16), np.asarray(ref),
                               rtol=3e-2, atol=3e-2)

    # 4) Optional bandwidth-saving output dtype (bf16 stores).
    out_bf16_out = sae_forward(x, params, out_dtype=jnp.bfloat16)
    out_bf16_out = jax.block_until_ready(out_bf16_out)
    np.testing.assert_allclose(np.asarray(out_bf16_out.astype(jnp.float32)),
                               np.asarray(ref), rtol=5e-2, atol=5e-2)

    print("KERNEL_OK")
</pallas_src>

<mosaic_0001>
module attributes {stable_mosaic.version = 11 : i64} {
  func.func @sae_kernel(%arg0: i32, %arg1: memref<8x128xf32, #tpu.memory_space<vmem>>, %arg2: memref<128x20xf32, #tpu.memory_space<vmem>>, %arg3: memref<1x20xf32, #tpu.memory_space<vmem>>, %arg4: memref<20x10xf32, #tpu.memory_space<vmem>>, %arg5: memref<1x10xf32, #tpu.memory_space<vmem>>, %arg6: memref<10x20xf32, #tpu.memory_space<vmem>>, %arg7: memref<1x20xf32, #tpu.memory_space<vmem>>, %arg8: memref<20x128xf32, #tpu.memory_space<vmem>>, %arg9: memref<1x128xf32, #tpu.memory_space<vmem>>, %arg10: memref<8x128xf32, #tpu.memory_space<vmem>>) attributes {dimension_semantics = [#tpu.dimension_semantics<parallel>], iteration_bounds = array<i64: 3>, scalar_prefetch = 0 : i64, scratch_operands = 0 : i64, tpu.core_type = #tpu.core_type<tc>, window_params = [{transform_indices = @transform_0, window_bounds = array<i64: 8, 128>}, {pipeline_mode = #tpu.pipeline_mode<synchronous>, transform_indices = @transform_1, window_bounds = array<i64: 128, 20>}, {pipeline_mode = #tpu.pipeline_mode<synchronous>, transform_indices = @transform_2, window_bounds = array<i64: 1, 20>}, {pipeline_mode = #tpu.pipeline_mode<synchronous>, transform_indices = @transform_3, window_bounds = array<i64: 20, 10>}, {pipeline_mode = #tpu.pipeline_mode<synchronous>, transform_indices = @transform_4, window_bounds = array<i64: 1, 10>}, {pipeline_mode = #tpu.pipeline_mode<synchronous>, transform_indices = @transform_5, window_bounds = array<i64: 10, 20>}, {pipeline_mode = #tpu.pipeline_mode<synchronous>, transform_indices = @transform_6, window_bounds = array<i64: 1, 20>}, {pipeline_mode = #tpu.pipeline_mode<synchronous>, transform_indices = @transform_7, window_bounds = array<i64: 20, 128>}, {pipeline_mode = #tpu.pipeline_mode<synchronous>, transform_indices = @transform_8, window_bounds = array<i64: 1, 128>}, {transform_indices = @transform_9, window_bounds = array<i64: 8, 128>}]} {
    %c0 = arith.constant 0 : index
    %c0_0 = arith.constant 0 : index
    %0 = vector.load %arg1[%c0, %c0_0] : memref<8x128xf32, #tpu.memory_space<vmem>>, vector<8x128xf32>
    %c0_1 = arith.constant 0 : index
    %c0_2 = arith.constant 0 : index
    %1 = vector.load %arg2[%c0_1, %c0_2] : memref<128x20xf32, #tpu.memory_space<vmem>>, vector<128x20xf32>
    %cst = arith.constant dense<0.000000e+00> : vector<8x20xf32>
    %2 = tpu.matmul %0, %1, %cst {dimension_numbers = #tpu.dot_dimension_numbers<[1], [0], [0], [1], [0, 0, 1, 1], [], []>} : vector<8x128xf32>, vector<128x20xf32>, vector<8x20xf32> -> vector<8x20xf32>
    %c0_3 = arith.constant 0 : index
    %c0_4 = arith.constant 0 : index
    %3 = vector.load %arg3[%c0_3, %c0_4] : memref<1x20xf32, #tpu.memory_space<vmem>>, vector<1x20xf32>
    %4 = vector.broadcast %3 : vector<1x20xf32> to vector<8x20xf32>
    %5 = arith.addf %2, %4 : vector<8x20xf32>
    %6 = arith.negf %5 : vector<8x20xf32>
    %7 = math.exp %6 : vector<8x20xf32>
    %cst_5 = arith.constant 1.000000e+00 : f32
    %8 = vector.broadcast %cst_5 : f32 to vector<8x20xf32>
    %9 = arith.addf %8, %7 : vector<8x20xf32>
    %10 = arith.divf %8, %9 : vector<8x20xf32>
    %c0_6 = arith.constant 0 : index
    %c0_7 = arith.constant 0 : index
    %11 = vector.load %arg4[%c0_6, %c0_7] : memref<20x10xf32, #tpu.memory_space<vmem>>, vector<20x10xf32>
    %cst_8 = arith.constant dense<0.000000e+00> : vector<8x10xf32>
    %12 = tpu.matmul %10, %11, %cst_8 {dimension_numbers = #tpu.dot_dimension_numbers<[1], [0], [0], [1], [0, 0, 1, 1], [], []>} : vector<8x20xf32>, vector<20x10xf32>, vector<8x10xf32> -> vector<8x10xf32>
    %c0_9 = arith.constant 0 : index
    %c0_10 = arith.constant 0 : index
    %13 = vector.load %arg5[%c0_9, %c0_10] : memref<1x10xf32, #tpu.memory_space<vmem>>, vector<1x10xf32>
    %14 = vector.broadcast %13 : vector<1x10xf32> to vector<8x10xf32>
    %15 = arith.addf %12, %14 : vector<8x10xf32>
    %16 = arith.negf %15 : vector<8x10xf32>
    %17 = math.exp %16 : vector<8x10xf32>
    %cst_11 = arith.constant 1.000000e+00 : f32
    %18 = vector.broadcast %cst_11 : f32 to vector<8x10xf32>
    %19 = arith.addf %18, %17 : vector<8x10xf32>
    %20 = arith.divf %18, %19 : vector<8x10xf32>
    %c0_12 = arith.constant 0 : index
    %c0_13 = arith.constant 0 : index
    %21 = vector.load %arg6[%c0_12, %c0_13] : memref<10x20xf32, #tpu.memory_space<vmem>>, vector<10x20xf32>
    %cst_14 = arith.constant dense<0.000000e+00> : vector<8x20xf32>
    %22 = tpu.matmul %20, %21, %cst_14 {dimension_numbers = #tpu.dot_dimension_numbers<[1], [0], [0], [1], [0, 0, 1, 1], [], []>} : vector<8x10xf32>, vector<10x20xf32>, vector<8x20xf32> -> vector<8x20xf32>
    %c0_15 = arith.constant 0 : index
    %c0_16 = arith.constant 0 : index
    %23 = vector.load %arg7[%c0_15, %c0_16] : memref<1x20xf32, #tpu.memory_space<vmem>>, vector<1x20xf32>
    %24 = vector.broadcast %23 : vector<1x20xf32> to vector<8x20xf32>
    %25 = arith.addf %22, %24 : vector<8x20xf32>
    %26 = arith.negf %25 : vector<8x20xf32>
    %27 = math.exp %26 : vector<8x20xf32>
    %cst_17 = arith.constant 1.000000e+00 : f32
    %28 = vector.broadcast %cst_17 : f32 to vector<8x20xf32>
    %29 = arith.addf %28, %27 : vector<8x20xf32>
    %30 = arith.divf %28, %29 : vector<8x20xf32>
    %c0_18 = arith.constant 0 : index
    %c0_19 = arith.constant 0 : index
    %31 = vector.load %arg8[%c0_18, %c0_19] : memref<20x128xf32, #tpu.memory_space<vmem>>, vector<20x128xf32>
    %cst_20 = arith.constant dense<0.000000e+00> : vector<8x128xf32>
    %32 = tpu.matmul %30, %31, %cst_20 {dimension_numbers = #tpu.dot_dimension_numbers<[1], [0], [0], [1], [0, 0, 1, 1], [], []>} : vector<8x20xf32>, vector<20x128xf32>, vector<8x128xf32> -> vector<8x128xf32>
    %c0_21 = arith.constant 0 : index
    %c0_22 = arith.constant 0 : index
    %33 = vector.load %arg9[%c0_21, %c0_22] : memref<1x128xf32, #tpu.memory_space<vmem>>, vector<1x128xf32>
    %34 = vector.broadcast %33 : vector<1x128xf32> to vector<8x128xf32>
    %35 = arith.addf %32, %34 : vector<8x128xf32>
    %c0_23 = arith.constant 0 : index
    %c0_24 = arith.constant 0 : index
    %36 = vector.load %arg10[%c0_23, %c0_24] : memref<8x128xf32, #tpu.memory_space<vmem>>, vector<8x128xf32>
    tpu.vector_store %arg10[%c0_23, %c0_24], %35 {strides = array<i32>} : memref<8x128xf32, #tpu.memory_space<vmem>>, vector<8x128xf32>,
    return
  }
  func.func @transform_0(%arg0: i32) -> (i32, i32) {
    %c0_i32 = arith.constant 0 : i32
    %c0_i32_0 = arith.constant 0 : i32
    return %arg0, %c0_i32 : i32, i32
  }
  func.func @transform_1(%arg0: i32) -> (i32, i32) {
    %c0_i32 = arith.constant 0 : i32
    %c0_i32_0 = arith.constant 0 : i32
    %c0_i32_1 = arith.constant 0 : i32
    return %c0_i32, %c0_i32_0 : i32, i32
  }
  func.func @transform_2(%arg0: i32) -> (i32, i32) {
    %c0_i32 = arith.constant 0 : i32
    %c0_i32_0 = arith.constant 0 : i32
    %c0_i32_1 = arith.constant 0 : i32
    return %c0_i32, %c0_i32_0 : i32, i32
  }
  func.func @transform_3(%arg0: i32) -> (i32, i32) {
    %c0_i32 = arith.constant 0 : i32
    %c0_i32_0 = arith.constant 0 : i32
    %c0_i32_1 = arith.constant 0 : i32
    return %c0_i32, %c0_i32_0 : i32, i32
  }
  func.func @transform_4(%arg0: i32) -> (i32, i32) {
    %c0_i32 = arith.constant 0 : i32
    %c0_i32_0 = arith.constant 0 : i32
    %c0_i32_1 = arith.constant 0 : i32
    return %c0_i32, %c0_i32_0 : i32, i32
  }
  func.func @transform_5(%arg0: i32) -> (i32, i32) {
    %c0_i32 = arith.constant 0 : i32
    %c0_i32_0 = arith.constant 0 : i32
    %c0_i32_1 = arith.constant 0 : i32
    return %c0_i32, %c0_i32_0 : i32, i32
  }
  func.func @transform_6(%arg0: i32) -> (i32, i32) {
    %c0_i32 = arith.constant 0 : i32
    %c0_i32_0 = arith.constant 0 : i32
    %c0_i32_1 = arith.constant 0 : i32
    return %c0_i32, %c0_i32_0 : i32, i32
  }
  func.func @transform_7(%arg0: i32) -> (i32, i32) {
    %c0_i32 = arith.constant 0 : i32
    %c0_i32_0 = arith.constant 0 : i32
    %c0_i32_1 = arith.constant 0 : i32
    return %c0_i32, %c0_i32_0 : i32, i32
  }
  func.func @transform_8(%arg0: i32) -> (i32, i32) {
    %c0_i32 = arith.constant 0 : i32
    %c0_i32_0 = arith.constant 0 : i32
    %c0_i32_1 = arith.constant 0 : i32
    return %c0_i32, %c0_i32_0 : i32, i32
  }
  func.func @transform_9(%arg0: i32) -> (i32, i32) {
    %c0_i32 = arith.constant 0 : i32
    %c0_i32_0 = arith.constant 0 : i32
    return %arg0, %c0_i32 : i32, i32
  }
}

</mosaic_0001>

<llo_original>
// kernel: tpu_custom_call.1
$region0: #{tpu_custom_call.1}
  #allocation0 [shape = 'u32[]', space=smem, size = 0x4, offset = 0x4, fixed_abs, tag = 'smem constant byte address 0x4 - core index']
  #allocation1 [shape = 'u32[72,128]{1,0:T(1,128)}', space=vmem, size = 0x9000, scoped, tag = 'internal scratch']
  %s0 = inlined_call_operand.vmem [shape: f32[24,128], index: 0, kind: input, shape index: {}]
  %s1 = inlined_call_operand.vmem [shape: f32[128,20], index: 1, kind: input, shape index: {}]
  %s2 = inlined_call_operand.vmem [shape: f32[1,20], index: 2, kind: input, shape index: {}]
  %s3 = inlined_call_operand.vmem [shape: f32[20,10], index: 3, kind: input, shape index: {}]
  %s4 = inlined_call_operand.vmem [shape: f32[1,10], index: 4, kind: input, shape index: {}]
  %s5 = inlined_call_operand.vmem [shape: f32[10,20], index: 5, kind: input, shape index: {}]
  %s6 = inlined_call_operand.vmem [shape: f32[1,20], index: 6, kind: input, shape index: {}]
  %s7 = inlined_call_operand.vmem [shape: f32[20,128], index: 7, kind: input, shape index: {}]
  %s8 = inlined_call_operand.vmem [shape: f32[1,128], index: 8, kind: input, shape index: {}]
  %s9 = inlined_call_operand.hbm [shape: f32[24,128], index: 9, kind: output, shape index: {}]
  %s10 = sld [smem:[#allocation0]]
  $region69: #{tpu_custom_call.1} parent=0
    _
  %s12 = ssub.s32 1, %s10
  %s13 = scalar_select 0, %s12, %s10
  $region1: #{tpu_custom_call.1} parent=0
    #allocation2 [shape = 'u8[8192]{0}', space=vmem, size = 0x2000, scoped, tag = 'output window, operand 0']
    #allocation3 [shape = 's32[2]{0}', space=sflag, size = 0x8, scoped, tag = 'scoped memory for tpu_custom_call.1']
    %14 = vsyncpa [#allocation3], 0
    %s15 = scalar_lea.sflag [#allocation3], 1
    %16 = vsyncpa %s15, 0
    loop: start=0, step=1, limit=5
    $region2: #{tpu_custom_call.1} parent=1 // loop_pre_header
      _
    $region3: #{tpu_custom_call.1} parent=1 // loop_header
      %s18 = sphi 0, %s22
      %p19 = scmp.ge.s32.totalorder %s18, 5
      %s28 = sphi 0, %s30
      %s31 = sphi 0, %s28
      %s32 = sphi 0, %s31
      %s48 = sphi 0, %s32
      %s52 = sphi 0, %s52
      %s54 = sphi 0, %s52
      %s55 = sphi 0, %s54
      %s69 = sphi 0, %s55
      %s73 = sphi 0, %s73
      %s75 = sphi 0, %s73
      %s76 = sphi 0, %s75
      %s90 = sphi 0, %s76
      %s94 = sphi 0, %s94
      %s96 = sphi 0, %s94
      %s97 = sphi 0, %s96
      %s111 = sphi 0, %s97
      %s115 = sphi 0, %s115
      %s117 = sphi 0, %s115
      %s118 = sphi 0, %s117
      %s132 = sphi 0, %s118
      %s136 = sphi 0, %s136
      %s138 = sphi 0, %s136
      %s139 = sphi 0, %s138
      %s153 = sphi 0, %s139
      %s157 = sphi 0, %s157
      %s159 = sphi 0, %s157
      %s160 = sphi 0, %s159
      %s174 = sphi 0, %s160
      %s178 = sphi 0, %s178
      %s180 = sphi 0, %s178
      %s181 = sphi 0, %s180
      %s195 = sphi 0, %s181
      %s199 = sphi 0, %s199
      %s201 = sphi 0, %s199
      %s202 = sphi 0, %s201
      %s216 = sphi 0, %s202
      %s222 = sphi 0, %s224
      %s225 = sphi 0, %s222
      %s226 = sphi 0, %s225
      %s242 = sphi 0, %s226
    $region4: #{tpu_custom_call.1} parent=1 // loop_header_branch
      %21 = sbr.rel (%p19) target = $region8
    $region5: #{tpu_custom_call.1} parent=1 // loop_body
      %s23 = ssub.s32 %s18, 1
      %s24 = ssub.s32 %s18, 2
      %s25 = sadd.s32 %s18, 1
      %s26 = ssub.s32 %s18, %s25
      %p27 = scmp.eq.s32.totalorder %s26, 0
      %s29 = sadd.s32 %s28, 1
      %s30 = scalar_select %p27, %s28, %s29
      %p33 = pneg %p27
      %p34 = scmp.eq.s32.totalorder %s18, 2
      %p35 = por %p33, %p34
      %p36 = scmp.ne.s32.totalorder %s28, %s31
      %p37 = scmp.eq.s32.totalorder %s18, 0
      %p38 = por %p36, %p37
      %p39 = scmp.ne.s32.totalorder %s28, %s31
      %p40 = scmp.eq.s32.totalorder %s23, 2
      %p41 = por %p39, %p40
      %p42 = scmp.ne.s32.totalorder %s31, %s32
      %p43 = scmp.eq.s32.totalorder %s23, 0
      %p44 = por %p42, %p43
      %p45 = scmp.ne.s32.totalorder %s31, %s32
      %p46 = scmp.eq.s32.totalorder %s24, 2
      %p47 = por %p45, %p46
      %p49 = scmp.ne.s32.totalorder %s32, %s48
      %p50 = scmp.eq.s32.totalorder %s24, 0
      %p51 = por %p49, %p50
      %s53 = sadd.s32 %s52, 1
      %p56 = scmp.eq.s32.totalorder %s18, 2
      %p57 = scmp.ne.s32.totalorder %s52, %s54
      %p58 = scmp.eq.s32.totalorder %s18, 0
      %p59 = por %p57, %p58
      %p60 = scmp.ne.s32.totalorder %s52, %s54
      %p61 = scmp.eq.s32.totalorder %s23, 2
      %p62 = por %p60, %p61
      %p63 = scmp.ne.s32.totalorder %s54, %s55
      %p64 = scmp.eq.s32.totalorder %s23, 0
      %p65 = por %p63, %p64
      %p66 = scmp.ne.s32.totalorder %s54, %s55
      %p67 = scmp.eq.s32.totalorder %s24, 2
      %p68 = por %p66, %p67
      %p70 = scmp.ne.s32.totalorder %s55, %s69
      %p71 = scmp.eq.s32.totalorder %s24, 0
      %p72 = por %p70, %p71
      %s74 = sadd.s32 %s73, 1
      %p77 = scmp.eq.s32.totalorder %s18, 2
      %p78 = scmp.ne.s32.totalorder %s73, %s75
      %p79 = scmp.eq.s32.totalorder %s18, 0
      %p80 = por %p78, %p79
      %p81 = scmp.ne.s32.totalorder %s73, %s75
      %p82 = scmp.eq.s32.totalorder %s23, 2
      %p83 = por %p81, %p82
      %p84 = scmp.ne.s32.totalorder %s75, %s76
      %p85 = scmp.eq.s32.totalorder %s23, 0
      %p86 = por %p84, %p85
      %p87 = scmp.ne.s32.totalorder %s75, %s76
      %p88 = scmp.eq.s32.totalorder %s24, 2
      %p89 = por %p87, %p88
      %p91 = scmp.ne.s32.totalorder %s76, %s90
      %p92 = scmp.eq.s32.totalorder %s24, 0
      %p93 = por %p91, %p92
      %s95 = sadd.s32 %s94, 1
      %p98 = scmp.eq.s32.totalorder %s18, 2
      %p99 = scmp.ne.s32.totalorder %s94, %s96
      %p100 = scmp.eq.s32.totalorder %s18, 0
      %p101 = por %p99, %p100
      %p102 = scmp.ne.s32.totalorder %s94, %s96
      %p103 = scmp.eq.s32.totalorder %s23, 2
      %p104 = por %p102, %p103
      %p105 = scmp.ne.s32.totalorder %s96, %s97
      %p106 = scmp.eq.s32.totalorder %s23, 0
      %p107 = por %p105, %p106
      %p108 = scmp.ne.s32.totalorder %s96, %s97
      %p109 = scmp.eq.s32.totalorder %s24, 2
      %p110 = por %p108, %p109
      %p112 = scmp.ne.s32.totalorder %s97, %s111
      %p113 = scmp.eq.s32.totalorder %s24, 0
      %p114 = por %p112, %p113
      %s116 = sadd.s32 %s115, 1
      %p119 = scmp.eq.s32.totalorder %s18, 2
      %p120 = scmp.ne.s32.totalorder %s115, %s117
      %p121 = scmp.eq.s32.totalorder %s18, 0
      %p122 = por %p120, %p121
      %p123 = scmp.ne.s32.totalorder %s115, %s117
      %p124 = scmp.eq.s32.totalorder %s23, 2
      %p125 = por %p123, %p124
      %p126 = scmp.ne.s32.totalorder %s117, %s118
      %p127 = scmp.eq.s32.totalorder %s23, 0
      %p128 = por %p126, %p127
      %p129 = scmp.ne.s32.totalorder %s117, %s118
      %p130 = scmp.eq.s32.totalorder %s24, 2
      %p131 = por %p129, %p130
      %p133 = scmp.ne.s32.totalorder %s118, %s132
      %p134 = scmp.eq.s32.totalorder %s24, 0
      %p135 = por %p133, %p134
      %s137 = sadd.s32 %s136, 1
      %p140 = scmp.eq.s32.totalorder %s18, 2
      %p141 = scmp.ne.s32.totalorder %s136, %s138
      %p142 = scmp.eq.s32.totalorder %s18, 0
      %p143 = por %p141, %p142
      %p144 = scmp.ne.s32.totalorder %s136, %s138
      %p145 = scmp.eq.s32.totalorder %s23, 2
      %p146 = por %p144, %p145
      %p147 = scmp.ne.s32.totalorder %s138, %s139
      %p148 = scmp.eq.s32.totalorder %s23, 0
      %p149 = por %p147, %p148
      %p150 = scmp.ne.s32.totalorder %s138, %s139
      %p151 = scmp.eq.s32.totalorder %s24, 2
      %p152 = por %p150, %p151
      %p154 = scmp.ne.s32.totalorder %s139, %s153
      %p155 = scmp.eq.s32.totalorder %s24, 0
      %p156 = por %p154, %p155
      %s158 = sadd.s32 %s157, 1
      %p161 = scmp.eq.s32.totalorder %s18, 2
      %p162 = scmp.ne.s32.totalorder %s157, %s159
      %p163 = scmp.eq.s32.totalorder %s18, 0
      %p164 = por %p162, %p163
      %p165 = scmp.ne.s32.totalorder %s157, %s159
      %p166 = scmp.eq.s32.totalorder %s23, 2
      %p167 = por %p165, %p166
      %p168 = scmp.ne.s32.totalorder %s159, %s160
      %p169 = scmp.eq.s32.totalorder %s23, 0
      %p170 = por %p168, %p169
      %p171 = scmp.ne.s32.totalorder %s159, %s160
      %p172 = scmp.eq.s32.totalorder %s24, 2
      %p173 = por %p171, %p172
      %p175 = scmp.ne.s32.totalorder %s160, %s174
      %p176 = scmp.eq.s32.totalorder %s24, 0
      %p177 = por %p175, %p176
      %s179 = sadd.s32 %s178, 1
      %p182 = scmp.eq.s32.totalorder %s18, 2
      %p183 = scmp.ne.s32.totalorder %s178, %s180
      %p184 = scmp.eq.s32.totalorder %s18, 0
      %p185 = por %p183, %p184
      %p186 = scmp.ne.s32.totalorder %s178, %s180
      %p187 = scmp.eq.s32.totalorder %s23, 2
      %p188 = por %p186, %p187
      %p189 = scmp.ne.s32.totalorder %s180, %s181
      %p190 = scmp.eq.s32.totalorder %s23, 0
      %p191 = por %p189, %p190
      %p192 = scmp.ne.s32.totalorder %s180, %s181
      %p193 = scmp.eq.s32.totalorder %s24, 2
      %p194 = por %p192, %p193
      %p196 = scmp.ne.s32.totalorder %s181, %s195
      %p197 = scmp.eq.s32.totalorder %s24, 0
      %p198 = por %p196, %p197
      %s200 = sadd.s32 %s199, 1
      %p203 = scmp.eq.s32.totalorder %s18, 2
      %p204 = scmp.ne.s32.totalorder %s199, %s201
      %p205 = scmp.eq.s32.totalorder %s18, 0
      %p206 = por %p204, %p205
      %p207 = scmp.ne.s32.totalorder %s199, %s201
      %p208 = scmp.eq.s32.totalorder %s23, 2
      %p209 = por %p207, %p208
      %p210 = scmp.ne.s32.totalorder %s201, %s202
      %p211 = scmp.eq.s32.totalorder %s23, 0
      %p212 = por %p210, %p211
      %p213 = scmp.ne.s32.totalorder %s201, %s202
      %p214 = scmp.eq.s32.totalorder %s24, 2
      %p215 = por %p213, %p214
      %p217 = scmp.ne.s32.totalorder %s202, %s216
      %p218 = scmp.eq.s32.totalorder %s24, 0
      %p219 = por %p217, %p218
      %s220 = ssub.s32 %s18, %s25
      %p221 = scmp.eq.s32.totalorder %s220, 0
      %s223 = sadd.s32 %s222, 1
      %s224 = scalar_select %p221, %s222, %s223
      %p227 = pneg %p221
      %p228 = scmp.eq.s32.totalorder %s18, 2
      %p229 = por %p227, %p228
      %p230 = scmp.ne.s32.totalorder %s222, %s225
      %p231 = scmp.eq.s32.totalorder %s18, 0
      %p232 = por %p230, %p231
      %p233 = scmp.ne.s32.totalorder %s222, %s225
      %p234 = scmp.eq.s32.totalorder %s23, 2
      %p235 = por %p233, %p234
      %p236 = scmp.ne.s32.totalorder %s225, %s226
      %p237 = scmp.eq.s32.totalorder %s23, 0
      %p238 = por %p236, %p237
      %p239 = scmp.ne.s32.totalorder %s225, %s226
      %p240 = scmp.eq.s32.totalorder %s24, 2
      %p241 = por %p239, %p240
      %p243 = scmp.ne.s32.totalorder %s226, %s242
      %p244 = scmp.eq.s32.totalorder %s24, 0
      %p245 = por %p243, %p244
      %p246 = scmp.le.s32.totalorder 1, %s18
      %p247 = scmp.lt.s32.totalorder %s18, 4
      %p248 = pnand %p246, %p247
      %p249 = pneg %p248
      // Predicated region
      $region9: #{tpu_custom_call.1} parent=5 // pred_check
        _
      $region10: #{tpu_custom_call.1} parent=5 // pred_check_branch
        %251 = sbr.rel (%p248) target = $region12
      $region11: #{tpu_custom_call.1} parent=5 // pred_region
        %s252 = ssub.s32 %s18, 1
        // Predicated region
        $region13: #{tpu_custom_call.1} parent=11 // pred_check
          %p253 = pneg %p65
        $region14: #{tpu_custom_call.1} parent=11 // pred_check_branch
          %255 = sbr.rel (%p253) target = $region16
        $region15: #{tpu_custom_call.1} parent=11 // pred_region
          _
        $region16: #{tpu_custom_call.1} parent=11 // pred_fallthru
          _
        // Predicated region
        $region17: #{tpu_custom_call.1} parent=11 // pred_check
          %p256 = pneg %p86
        $region18: #{tpu_custom_call.1} parent=11 // pred_check_branch
          %258 = sbr.rel (%p256) target = $region20
        $region19: #{tpu_custom_call.1} parent=11 // pred_region
          _
        $region20: #{tpu_custom_call.1} parent=11 // pred_fallthru
          _
        // Predicated region
        $region21: #{tpu_custom_call.1} parent=11 // pred_check
          %p259 = pneg %p107
        $region22: #{tpu_custom_call.1} parent=11 // pred_check_branch
          %261 = sbr.rel (%p259) target = $region24
        $region23: #{tpu_custom_call.1} parent=11 // pred_region
          _
        $region24: #{tpu_custom_call.1} parent=11 // pred_fallthru
          _
        // Predicated region
        $region25: #{tpu_custom_call.1} parent=11 // pred_check
          %p262 = pneg %p128
        $region26: #{tpu_custom_call.1} parent=11 // pred_check_branch
          %264 = sbr.rel (%p262) target = $region28
        $region27: #{tpu_custom_call.1} parent=11 // pred_region
          _
        $region28: #{tpu_custom_call.1} parent=11 // pred_fallthru
          _
        // Predicated region
        $region29: #{tpu_custom_call.1} parent=11 // pred_check
          %p265 = pneg %p149
        $region30: #{tpu_custom_call.1} parent=11 // pred_check_branch
          %267 = sbr.rel (%p265) target = $region32
        $region31: #{tpu_custom_call.1} parent=11 // pred_region
          _
        $region32: #{tpu_custom_call.1} parent=11 // pred_fallthru
          _
        // Predicated region
        $region33: #{tpu_custom_call.1} parent=11 // pred_check
          %p268 = pneg %p170
        $region34: #{tpu_custom_call.1} parent=11 // pred_check_branch
          %270 = sbr.rel (%p268) target = $region36
        $region35: #{tpu_custom_call.1} parent=11 // pred_region
          _
        $region36: #{tpu_custom_call.1} parent=11 // pred_fallthru
          _
        // Predicated region
        $region37: #{tpu_custom_call.1} parent=11 // pred_check
          %p271 = pneg %p191
        $region38: #{tpu_custom_call.1} parent=11 // pred_check_branch
          %273 = sbr.rel (%p271) target = $region40
        $region39: #{tpu_custom_call.1} parent=11 // pred_region
          _
        $region40: #{tpu_custom_call.1} parent=11 // pred_fallthru
          _
        // Predicated region
        $region41: #{tpu_custom_call.1} parent=11 // pred_check
          %p274 = pneg %p212
        $region42: #{tpu_custom_call.1} parent=11 // pred_check_branch
          %276 = sbr.rel (%p274) target = $region44
        $region43: #{tpu_custom_call.1} parent=11 // pred_region
          _
        $region44: #{tpu_custom_call.1} parent=11 // pred_fallthru
          _
      $region12: #{tpu_custom_call.1} parent=5 // pred_fallthru
        _
      %p277 = scmp.lt.s32.totalorder %s18, 3
      // Predicated region
      $region45: #{tpu_custom_call.1} parent=5 // pred_check
        %p278 = pneg %p277
      $region46: #{tpu_custom_call.1} parent=5 // pred_check_branch
        %280 = sbr.rel (%p278) target = $region48
      $region47: #{tpu_custom_call.1} parent=5 // pred_region
        // Predicated region
        $region49: #{tpu_custom_call.1} parent=47 // pred_check
          %p281 = pneg %p38
        $region50: #{tpu_custom_call.1} parent=47 // pred_check_branch
          %283 = sbr.rel (%p281) target = $region52
        $region51: #{tpu_custom_call.1} parent=47 // pred_region
          %p284 = scmp.lt.s32.totalorder %s18, 2
          %s285 = scalar_select %p284, %s18, 2
          %s286 = smul.addr %s285, 8
          %s287 = scalar_lea.vmem %s0, %s286
        $region52: #{tpu_custom_call.1} parent=47 // pred_fallthru
          _
      $region48: #{tpu_custom_call.1} parent=5 // pred_fallthru
        _
      %p288 = scmp.le.s32.totalorder 1, %s18
      %p289 = scmp.lt.s32.totalorder %s18, 4
      %p290 = pnand %p288, %p289
      %p291 = pneg %p290
      // Predicated region
      $region53: #{tpu_custom_call.1} parent=5 // pred_check
        _
      $region54: #{tpu_custom_call.1} parent=5 // pred_check_branch
        %293 = sbr.rel (%p290) target = $region56
      $region55: #{tpu_custom_call.1} parent=5 // pred_region
        %s294 = ssub.s32 %s18, 1
        %p295 = scmp.lt.s32.totalorder %s23, 2
        %s296 = scalar_select %p295, %s23, 2
        %s297 = smul.addr %s296, 8
        %s298 = scalar_lea.vmem %s0, %s297
        %p299 = pneg %p44
        %p300 = pneg %p41
        %p301 = pneg %p65
        %p302 = pneg %p62
        %p303 = pneg %p86
        %p304 = pneg %p83
        %p305 = pneg %p107
        %p306 = pneg %p104
        %p307 = pneg %p128
        %p308 = pneg %p125
        %p309 = pneg %p149
        %p310 = pneg %p146
        %p311 = pneg %p170
        %p312 = pneg %p167
        %p313 = pneg %p191
        %p314 = pneg %p188
        %p315 = pneg %p212
        %p316 = pneg %p209
        %p317 = pneg %p238
        %p318 = pneg %p235
        %s319 = sand.u32 %s225, 1
        %s320 = scalar_lea.sflag [#allocation3], %s319
        %s321 = sand.u32 %s225, 1
        %s322 = smul.addr %s321, 8
        %s323 = scalar_lea.vmem [#allocation2], %s322
        %p324 = scmp.lt.s32.totalorder %s23, 2
        %s325 = scalar_select %p324, %s23, 2
        %s326 = smul.addr %s325, 8
        %s327 = scalar_lea.vmem %s0, %s326
        %v328 = vld [vmem:[%s327] sm:$0xff]
        %v329 = vld [vmem:[%s1] sm:$0xff]
        %v330 = vld [vmem:[%s1 + $0x8] sm:$0xff]
        %v331 = vld [vmem:[%s1 + $0x10] sm:$0xff]
        %v332 = vld [vmem:[%s1 + $0x18] sm:$0xff]
        %v333 = vld [vmem:[%s1 + $0x20] sm:$0xff]
        %v334 = vld [vmem:[%s1 + $0x28] sm:$0xff]
        %v335 = vld [vmem:[%s1 + $0x30] sm:$0xff]
        %v336 = vld [vmem:[%s1 + $0x38] sm:$0xff]
        %v337 = vld [vmem:[%s1 + $0x40] sm:$0xff]
        %v338 = vld [vmem:[%s1 + $0x48] sm:$0xff]
        %v339 = vld [vmem:[%s1 + $0x50] sm:$0xff]
        %v340 = vld [vmem:[%s1 + $0x58] sm:$0xff]
        %v341 = vld [vmem:[%s1 + $0x60] sm:$0xff]
        %v342 = vld [vmem:[%s1 + $0x68] sm:$0xff]
        %v343 = vld [vmem:[%s1 + $0x70] sm:$0xff]
        %v344 = vld [vmem:[%s1 + $0x78] sm:$0xff]
        %v345 = vld [vmem:[%s2] sm:$0x1]
        %v347 = vperm.slane %v345, 0
        %349 = vmatpush.msra.mxu0 %v344
        %350 = vmatpush.msra.mxu0 %v343
        %351 = vmatpush.msra.mxu0 %v342
        %352 = vmatpush.msra.mxu0 %v341
        %353 = vmatpush.msra.mxu0 %v340
        %354 = vmatpush.msra.mxu0 %v339
        %355 = vmatpush.msra.mxu0 %v338
        %356 = vmatpush.msra.mxu0 %v337
        %357 = vmatpush.msra.mxu0 %v336
        %358 = vmatpush.msra.mxu0 %v335
        %359 = vmatpush.msra.mxu0 %v334
        %360 = vmatpush.msra.mxu0 %v333
        %361 = vmatpush.msra.mxu0 %v332
        %362 = vmatpush.msra.mxu0 %v331
        %363 = vmatpush.msra.mxu0 %v330
        %364 = vmatpush.msra.mxu0 %v329
        %365 = vmatmul.f32.gmra.mxu0 %v328
        %v366 = vpop.f32.mrf.mxu0
        %v367 = vadd.f32 %v347, %v366
        %368 = vdwg.mxu0
        %v369 = vxor.u32 %v367, 2147483648
        %v370 = vmul.f32 %v369, 1.442695
        %v371 = vpow.pop %v370
        %v372 = vadd.f32 %v371, 1.0
        %v373 = vrcp.pop %v372
        %v374 = vmul.f32 %v372, %v373
        %v375 = vsub.f32 1.0, %v374
        %v376 = vmul.f32 %v373, %v375
        %v377 = vadd.f32 %v373, %v376
        %vm378 = vweird.f32 %v372
        %vm379 = vweird.f32 %v373
        %vm380 = vmor %vm378, %vm379
        %v381 = vsel %vm380, %v373, %v377
        %v382 = vand.u32 2147483647, %v372
        %vm383 = vcmp.eq.f32.partialorder %v382, 8.507059e+37
        %v384 = vand.u32 %v372, 2147483648
        %v385 = vor.u32 1.1754944e-38, %v384
        %v386 = vsel %vm383, %v385, %v381
        %v387 = vmul.f32 1.0, %v386
        %v388 = vld [vmem:[%s3] sm:$0xff]
        %v389 = vld [vmem:[%s3 + $0x8] sm:$0xff]
        %v390 = vld [vmem:[%s3 + $0x10] sm:$0xf]
        %v391 = vld [vmem:[%s4] sm:$0x1]
        %v393 = vperm.slane %v391, 0
        %vm395 = vcmask 162816
        %v397 = vsel %vm395, %v387, 0
        %vm399 = vcmask 1043456
        %v401 = vsel %vm399, %v390, 0
        %403 = vmatpush.msra.mxu0 0.0
        %404 = vmatpush.msra.mxu0 0.0
        %405 = vmatpush.msra.mxu0 0.0
        %406 = vmatpush.msra.mxu0 0.0
        %407 = vmatpush.msra.mxu0 0.0
        %408 = vmatpush.msra.mxu0 0.0
        %409 = vmatpush.msra.mxu0 0.0
        %410 = vmatpush.msra.mxu0 0.0
        %411 = vmatpush.msra.mxu0 0.0
        %412 = vmatpush.msra.mxu0 0.0
        %413 = vmatpush.msra.mxu0 0.0
        %414 = vmatpush.msra.mxu0 0.0
        %415 = vmatpush.msra.mxu0 0.0
        %416 = vmatpush.msra.mxu0 %v401
        %417 = vmatpush.msra.mxu0 %v389
        %418 = vmatpush.msra.mxu0 %v388
        %419 = vmatmul.f32.gmra.mxu0 %v397
        %v420 = vpop.f32.mrf.mxu0
        %v421 = vadd.f32 %v393, %v420
        %422 = vdwg.mxu0
        %v423 = vxor.u32 %v421, 2147483648
        %v424 = vmul.f32 %v423, 1.442695
        %v425 = vpow.pop %v424
        %v426 = vadd.f32 %v425, 1.0
        %v427 = vrcp.pop %v426
        %v428 = vmul.f32 %v426, %v427
        %v429 = vsub.f32 1.0, %v428
        %v430 = vmul.f32 %v427, %v429
        %v431 = vadd.f32 %v427, %v430
        %vm432 = vweird.f32 %v426
        %vm433 = vweird.f32 %v427
        %vm434 = vmor %vm432, %vm433
        %v435 = vsel %vm434, %v427, %v431
        %v436 = vand.u32 2147483647, %v426
        %vm437 = vcmp.eq.f32.partialorder %v436, 8.507059e+37
        %v438 = vand.u32 %v426, 2147483648
        %v439 = vor.u32 1.1754944e-38, %v438
        %v440 = vsel %vm437, %v439, %v435
        %v441 = vmul.f32 1.0, %v440
        %v442 = vld [vmem:[%s5] sm:$0xff]
        %v443 = vld [vmem:[%s5 + $0x8] sm:$0x3]
        %v444 = vld [vmem:[%s6] sm:$0x1]
        %v446 = vperm.slane %v444, 0
        %vm448 = vcmask 80896
        %v450 = vsel %vm448, %v441, 0
        %vm452 = vcmask 1041408
        %v454 = vsel %vm452, %v443, 0
        %456 = vmatpush.msra.mxu0 0.0
        %457 = vmatpush.msra.mxu0 0.0
        %458 = vmatpush.msra.mxu0 0.0
        %459 = vmatpush.msra.mxu0 0.0
        %460 = vmatpush.msra.mxu0 0.0
        %461 = vmatpush.msra.mxu0 0.0
        %462 = vmatpush.msra.mxu0 0.0
        %463 = vmatpush.msra.mxu0 0.0
        %464 = vmatpush.msra.mxu0 0.0
        %465 = vmatpush.msra.mxu0 0.0
        %466 = vmatpush.msra.mxu0 0.0
        %467 = vmatpush.msra.mxu0 0.0
        %468 = vmatpush.msra.mxu0 0.0
        %469 = vmatpush.msra.mxu0 0.0
        %470 = vmatpush.msra.mxu0 %v454
        %471 = vmatpush.msra.mxu0 %v442
        %472 = vmatmul.f32.gmra.mxu0 %v450
        %v473 = vpop.f32.mrf.mxu0
        %v474 = vadd.f32 %v446, %v473
        %475 = vdwg.mxu0
        %v476 = vxor.u32 %v474, 2147483648
        %v477 = vmul.f32 %v476, 1.442695
        %v478 = vpow.pop %v477
        %v479 = vadd.f32 %v478, 1.0
        %v480 = vrcp.pop %v479
        %v481 = vmul.f32 %v479, %v480
        %v482 = vsub.f32 1.0, %v481
        %v483 = vmul.f32 %v480, %v482
        %v484 = vadd.f32 %v480, %v483
        %vm485 = vweird.f32 %v479
        %vm486 = vweird.f32 %v480
        %vm487 = vmor %vm485, %vm486
        %v488 = vsel %vm487, %v480, %v484
        %v489 = vand.u32 2147483647, %v479
        %vm490 = vcmp.eq.f32.partialorder %v489, 8.507059e+37
        %v491 = vand.u32 %v479, 2147483648
        %v492 = vor.u32 1.1754944e-38, %v491
        %v493 = vsel %vm490, %v492, %v488
        %v494 = vmul.f32 1.0, %v493
        %v495 = vld [vmem:[%s7] sm:$0xff]
        %v496 = vld [vmem:[%s7 + $0x8] sm:$0xff]
        %v497 = vld [vmem:[%s7 + $0x10] sm:$0xf]
        %v498 = vld [vmem:[%s8] sm:$0x1]
        %v500 = vperm.slane %v498, 0
        %v503 = vsel %vm395, %v494, 0
        %v506 = vsel %vm399, %v497, 0
        %508 = vmatpush.msra.mxu0 0.0
        %509 = vmatpush.msra.mxu0 0.0
        %510 = vmatpush.msra.mxu0 0.0
        %511 = vmatpush.msra.mxu0 0.0
        %512 = vmatpush.msra.mxu0 0.0
        %513 = vmatpush.msra.mxu0 0.0
        %514 = vmatpush.msra.mxu0 0.0
        %515 = vmatpush.msra.mxu0 0.0
        %516 = vmatpush.msra.mxu0 0.0
        %517 = vmatpush.msra.mxu0 0.0
        %518 = vmatpush.msra.mxu0 0.0
        %519 = vmatpush.msra.mxu0 0.0
        %520 = vmatpush.msra.mxu0 0.0
        %521 = vmatpush.msra.mxu0 %v506
        %522 = vmatpush.msra.mxu0 %v496
        %523 = vmatpush.msra.mxu0 %v495
        %524 = vmatmul.f32.gmra.mxu0 %v503
        %v525 = vpop.f32.mrf.mxu0
        %v526 = vadd.f32 %v500, %v525
        %527 = vdwg.mxu0
        %528 = vst [vmem:[%s323] sm:$0xff] %v526
        %s529 = sand.u32 %s225, 1
        %s530 = scalar_lea.sflag [#allocation3], %s529
        %s531 = sand.u32 %s225, 1
        %s532 = smul.addr %s531, 8
        %s533 = scalar_lea.vmem [#allocation2], %s532
        // Predicated region
        $region57: #{tpu_custom_call.1} parent=55 // pred_check
          %p534 = pneg %p235
        $region58: #{tpu_custom_call.1} parent=55 // pred_check_branch
          %536 = sbr.rel (%p534) target = $region60
        $region59: #{tpu_custom_call.1} parent=55 // pred_region
          %538 = vsyncadd %s530, 0
          %s539 = smul.addr %s23, 8
          %s540 = scalar_lea.hbm %s9, %s539
          %s542 = sshll.u32 %s533, 4
          %s543 = int_to_ptr.vmem [resolvable:$true] %s542
          %s544 = sshll.u32 %s540, 4
          %s545 = int_to_ptr.hbm [resolvable:$true] %s544
          %547 = dma.vmem_to_hbm [thread:$0]  %s543, 128, %s545, %s530
        $region60: #{tpu_custom_call.1} parent=55 // pred_fallthru
          _
      $region56: #{tpu_custom_call.1} parent=5 // pred_fallthru
        _
      %p548 = scmp.le.s32.totalorder 2, %s18
      // Predicated region
      $region61: #{tpu_custom_call.1} parent=5 // pred_check
        %p549 = pneg %p548
      $region62: #{tpu_custom_call.1} parent=5 // pred_check_branch
        %551 = sbr.rel (%p549) target = $region64
      $region63: #{tpu_custom_call.1} parent=5 // pred_region
        %s552 = ssub.s32 %s18, 2
        // Predicated region
        $region65: #{tpu_custom_call.1} parent=63 // pred_check
          %p553 = pneg %p241
        $region66: #{tpu_custom_call.1} parent=63 // pred_check_branch
          %555 = sbr.rel (%p553) target = $region68
        $region67: #{tpu_custom_call.1} parent=63 // pred_region
          %s556 = sand.u32 %s226, 1
          %s557 = scalar_lea.sflag [#allocation3], %s556
          %s558 = sand.u32 %s226, 1
          %s559 = smul.addr %s558, 8
          %s560 = scalar_lea.vmem [#allocation2], %s559
          %562 = dma.done %s557, 128
        $region68: #{tpu_custom_call.1} parent=63 // pred_fallthru
          _
      $region64: #{tpu_custom_call.1} parent=5 // pred_fallthru
        _
    $region6: #{tpu_custom_call.1} parent=1 // loop_footer
      %s22 = sadd.s32 1, %s18
    $region7: #{tpu_custom_call.1} parent=1 // loop_footer_branch
      %17 = sbr.rel target = $region3
    $region8: #{tpu_custom_call.1} parent=1 // loop_exit
      _
    %563 = vsyncpa [#allocation3], 1
    %s564 = scalar_lea.sflag [#allocation3], 1
    %565 = vsyncpa %s564, 1

</llo_original>
